<compile_context>
chip_gen: v7x
topology: tpu7x:2x2x1
jax: 0.10.0
libtpu: 0.0.40
codegen_flags: <defaults>
</compile_context>

<pallas_src>
import functools

import jax
import jax.numpy as jnp
from jax.experimental import pallas as pl
from jax.experimental.pallas import tpu as pltpu

D_IN = 2        # dim_input in the reference
HIDDEN = 32     # small stand-in for nn = 220
D_OUT = 1
LAYERS = [D_IN, HIDDEN, HIDDEN, HIDDEN, D_OUT]

# Layers with fan-in this small are done as VPU broadcast-FMAs instead of
# paying an MXU round-trip for a K that gets padded to 128.
_VPU_FANIN_MAX = 8


def _swish(x):
    return x * jax.nn.sigmoid(x)


def _ceil_to(v, m):
    return ((v + m - 1) // m) * m


def _last_layer_is_column(dims):
    """Final layer weight is packed transposed (as a column) when d_out == 1."""
    return dims[-1][1] == 1


def _pinn_kernel(layer_dims, x_ref, w_ref, b_ref, out_ref):
    """MLP forward for one batch tile, transposed (batch-on-lanes) layout.

    x_ref:   (d_in,  TM)       input features x batch tile
    w_ref:   (L, Hmax, Hmax)   packed weights; layer li at [li, :out, :in]
                               (last layer stored as a (in, 1) column when out==1)
    b_ref:   (L, Hmax, 1)      packed biases;  layer li at [li, :out, 0]
    out_ref: (d_out, TM)
    """
    n_layers = len(layer_dims)
    last_is_col = _last_layer_is_column(layer_dims)

    h = x_ref[...].astype(jnp.float32)                # (d_in, TM)
    for li in range(n_layers):
        d_in, d_out = layer_dims[li]
        is_last = li == n_layers - 1
        b = b_ref[li, :d_out, :]                      # (d_out, 1), lane broadcast

        if li == 0 and d_in <= _VPU_FANIN_MAX:
            # Tiny K: matmul as d_in broadcast FMAs on the VPU (MXU would pad
            # K to 128 for ~no work).
            w = w_ref[li, :d_out, :d_in]              # (d_out, d_in)
            acc = w[:, 0:1] * h[0:1, :]
            for k in range(1, d_in):
                acc = acc + w[:, k:k + 1] * h[k:k + 1, :]
            h_new = acc + b
        elif is_last and last_is_col:
            # Final H -> 1 projection: VPU multiply + XLU sublane reduce.
            w_col = w_ref[li, :d_in, :d_out]          # (d_in, 1), stored transposed
            h_new = jnp.sum(w_col * h, axis=0, keepdims=True) + b
        else:
            # Hidden layers: (d_out, d_in) @ (d_in, TM) on the MXU.
            w = w_ref[li, :d_out, :d_in]
            h_new = jnp.dot(w, h, preferred_element_type=jnp.float32) + b

        h = h_new if is_last else _swish(h_new)

    out_ref[...] = h.astype(out_ref.dtype)


def _layer_dims(params):
    """dims[li] = (in_features, out_features), from PyTorch-style (out, in) W."""
    return tuple((int(w.shape[1]), int(w.shape[0])) for w, _ in params)


def pack_params(params):
    """Pack per-layer (W(out,in), b(out,)) into two dense arrays.

    Returns (w_packed (L,Hmax,Hmax), b_packed (L,Hmax,1), dims).
    """
    dims = _layer_dims(params)
    n_layers = len(params)
    h_max = max(max(i, o) for i, o in dims)
    h_max = _ceil_to(h_max, 8)                        # sublane-aligned packing
    last_is_col = _last_layer_is_column(dims)

    w_packed = jnp.zeros((n_layers, h_max, h_max), jnp.float32)
    b_packed = jnp.zeros((n_layers, h_max, 1), jnp.float32)
    for li, (w, b) in enumerate(params):
        d_in, d_out = dims[li]
        if li == n_layers - 1 and last_is_col:
            w_packed = w_packed.at[li, :d_in, :d_out].set(w.T)
        else:
            w_packed = w_packed.at[li, :d_out, :d_in].set(w)
        b_packed = b_packed.at[li, :d_out, 0].set(b)
    return w_packed, b_packed, dims


@functools.partial(jax.jit, static_argnames=("tm",))
def pinn_forward(x, params, *, tm=512):
    """x: (N, D_IN) collocation points.  Returns (N, D_OUT)."""
    n, d_in = x.shape
    w_packed, b_packed, dims = pack_params(params)
    assert d_in == dims[0][0]
    d_out = dims[-1][1]

    # Batch tile: big enough to amortize per-grid-step overhead, but keep the
    # grid >= 2 when possible so ("parallel",) can shard across v7x's 2 TCs.
    if n >= 2 * 128:
        tm = min(tm, _ceil_to((n + 1) // 2, 128))
    else:
        tm = 128
    grid_n = (n + tm - 1) // tm
    n_pad = grid_n * tm

    # Lane-dense layout: batch on lanes, features on sublanes; pad the batch
    # tail in the wrapper and slice it off afterwards.
    x_t = jnp.zeros((d_in, n_pad), x.dtype).at[:, :n].set(x.T)

    out_t = pl.pallas_call(
        functools.partial(_pinn_kernel, dims),
        out_shape=jax.ShapeDtypeStruct((d_out, n_pad), x.dtype),
        grid_spec=pltpu.PrefetchScalarGridSpec(
            num_scalar_prefetch=0,
            grid=(grid_n,),
            in_specs=[
                pl.BlockSpec((d_in, tm), lambda i: (0, i)),
                pl.BlockSpec(w_packed.shape, lambda i: (0, 0, 0)),
                pl.BlockSpec(b_packed.shape, lambda i: (0, 0, 0)),
            ],
            out_specs=pl.BlockSpec((d_out, tm), lambda i: (0, i)),
        ),
        compiler_params=pltpu.CompilerParams(
            dimension_semantics=("parallel",)),
    )(x_t, w_packed, b_packed)

    return out_t[:, :n].T


def init_params(key, layer_sizes):
    """Xavier-uniform weights stored PyTorch-style as (out, in); zero biases."""
    params = []
    for i in range(len(layer_sizes) - 1):
        fan_in, fan_out = layer_sizes[i], layer_sizes[i + 1]
        key, sub = jax.random.split(key)
        limit = float(jnp.sqrt(6.0 / (fan_in + fan_out)))
        w = jax.random.uniform(sub, (fan_out, fan_in), jnp.float32,
                               minval=-limit, maxval=limit)
        b = jnp.zeros((fan_out,), jnp.float32)
        params.append((w, b))
    return params


def reference_forward(x, params):
    h = x
    for li, (w, b) in enumerate(params):
        h = h @ w.T + b
        if li != len(params) - 1:
            h = _swish(h)
    return h


if __name__ == "__main__":
    key = jax.random.PRNGKey(0)
    key, xkey = jax.random.split(key)

    # Batch of collocation points, (N, 2) inputs (e.g. (x, t)); deliberately
    # not a tile multiple to exercise the padded-tail path.
    N = 1000
    x = jax.random.normal(xkey, (N, D_IN), jnp.float32)

    # TODO(synk): reference `layers` list is degenerate ([2]); using the
    # canonical [2, H, H, H, 1] PINN stack with H=32 as a small stand-in.
    params = init_params(key, LAYERS)

    out = pinn_forward(x, params)
    out = jax.block_until_ready(out)

    ref = reference_forward(x, params)
    assert out.shape == (N, D_OUT)
    assert jnp.allclose(out, ref, atol=2e-5, rtol=1e-4), (
        float(jnp.max(jnp.abs(out - ref))))

    print("KERNEL_OK")
</pallas_src>

<mosaic_0001>
module attributes {stable_mosaic.version = 11 : i64} {
  func.func @_pinn_kernel(%arg0: i32, %arg1: memref<2x512xf32, #tpu.memory_space<vmem>>, %arg2: memref<4x32x32xf32, #tpu.memory_space<vmem>>, %arg3: memref<4x32x1xf32, #tpu.memory_space<vmem>>, %arg4: memref<1x512xf32, #tpu.memory_space<vmem>>) attributes {dimension_semantics = [#tpu.dimension_semantics<parallel>], iteration_bounds = array<i64: 2>, scalar_prefetch = 0 : i64, scratch_operands = 0 : i64, tpu.core_type = #tpu.core_type<tc>, window_params = [{transform_indices = @transform_0, window_bounds = array<i64: 2, 512>}, {pipeline_mode = #tpu.pipeline_mode<synchronous>, transform_indices = @transform_1, window_bounds = array<i64: 4, 32, 32>}, {pipeline_mode = #tpu.pipeline_mode<synchronous>, transform_indices = @transform_2, window_bounds = array<i64: 4, 32, 1>}, {transform_indices = @transform_3, window_bounds = array<i64: 1, 512>}]} {
    %c0 = arith.constant 0 : index
    %c0_0 = arith.constant 0 : index
    %0 = vector.load %arg1[%c0, %c0_0] : memref<2x512xf32, #tpu.memory_space<vmem>>, vector<2x512xf32>
    %c0_1 = arith.constant 0 : index
    %c0_2 = arith.constant 0 : index
    %c0_3 = arith.constant 0 : index
    %1 = vector.load %arg3[%c0_1, %c0_2, %c0_3] : memref<4x32x1xf32, #tpu.memory_space<vmem>>, vector<1x32x1xf32>
    %2 = vector.shape_cast %1 : vector<1x32x1xf32> to vector<32x1xf32>
    %c0_4 = arith.constant 0 : index
    %c0_5 = arith.constant 0 : index
    %c0_6 = arith.constant 0 : index
    %3 = vector.load %arg2[%c0_4, %c0_5, %c0_6] : memref<4x32x32xf32, #tpu.memory_space<vmem>>, vector<1x32x2xf32>
    %4 = vector.shape_cast %3 : vector<1x32x2xf32> to vector<32x2xf32>
    %5 = vector.extract_strided_slice %4 {offsets = [0, 0], sizes = [32, 1], strides = [1, 1]} : vector<32x2xf32> to vector<32x1xf32>
    %6 = vector.extract_strided_slice %0 {offsets = [0, 0], sizes = [1, 512], strides = [1, 1]} : vector<2x512xf32> to vector<1x512xf32>
    %7 = vector.broadcast %5 : vector<32x1xf32> to vector<32x512xf32>
    %8 = vector.broadcast %6 : vector<1x512xf32> to vector<32x512xf32>
    %9 = arith.mulf %7, %8 : vector<32x512xf32>
    %10 = vector.extract_strided_slice %4 {offsets = [0, 1], sizes = [32, 1], strides = [1, 1]} : vector<32x2xf32> to vector<32x1xf32>
    %11 = vector.extract_strided_slice %0 {offsets = [1, 0], sizes = [1, 512], strides = [1, 1]} : vector<2x512xf32> to vector<1x512xf32>
    %12 = vector.broadcast %10 : vector<32x1xf32> to vector<32x512xf32>
    %13 = vector.broadcast %11 : vector<1x512xf32> to vector<32x512xf32>
    %14 = arith.mulf %12, %13 : vector<32x512xf32>
    %15 = arith.addf %9, %14 : vector<32x512xf32>
    %16 = vector.broadcast %2 : vector<32x1xf32> to vector<32x512xf32>
    %17 = arith.addf %15, %16 : vector<32x512xf32>
    %18 = arith.negf %17 : vector<32x512xf32>
    %19 = math.exp %18 : vector<32x512xf32>
    %cst = arith.constant 1.000000e+00 : f32
    %20 = vector.broadcast %cst : f32 to vector<32x512xf32>
    %21 = arith.addf %20, %19 : vector<32x512xf32>
    %22 = arith.divf %20, %21 : vector<32x512xf32>
    %23 = arith.mulf %17, %22 : vector<32x512xf32>
    %c1 = arith.constant 1 : index
    %c0_7 = arith.constant 0 : index
    %c0_8 = arith.constant 0 : index
    %24 = vector.load %arg3[%c1, %c0_7, %c0_8] : memref<4x32x1xf32, #tpu.memory_space<vmem>>, vector<1x32x1xf32>
    %25 = vector.shape_cast %24 : vector<1x32x1xf32> to vector<32x1xf32>
    %c1_9 = arith.constant 1 : index
    %c0_10 = arith.constant 0 : index
    %c0_11 = arith.constant 0 : index
    %26 = vector.load %arg2[%c1_9, %c0_10, %c0_11] : memref<4x32x32xf32, #tpu.memory_space<vmem>>, vector<1x32x32xf32>
    %27 = vector.shape_cast %26 : vector<1x32x32xf32> to vector<32x32xf32>
    %cst_12 = arith.constant dense<0.000000e+00> : vector<32x512xf32>
    %28 = tpu.matmul %27, %23, %cst_12 {dimension_numbers = #tpu.dot_dimension_numbers<[1], [0], [0], [1], [0, 0, 1, 1], [], []>} : vector<32x32xf32>, vector<32x512xf32>, vector<32x512xf32> -> vector<32x512xf32>
    %29 = vector.broadcast %25 : vector<32x1xf32> to vector<32x512xf32>
    %30 = arith.addf %28, %29 : vector<32x512xf32>
    %31 = arith.negf %30 : vector<32x512xf32>
    %32 = math.exp %31 : vector<32x512xf32>
    %cst_13 = arith.constant 1.000000e+00 : f32
    %33 = vector.broadcast %cst_13 : f32 to vector<32x512xf32>
    %34 = arith.addf %33, %32 : vector<32x512xf32>
    %35 = arith.divf %33, %34 : vector<32x512xf32>
    %36 = arith.mulf %30, %35 : vector<32x512xf32>
    %c2 = arith.constant 2 : index
    %c0_14 = arith.constant 0 : index
    %c0_15 = arith.constant 0 : index
    %37 = vector.load %arg3[%c2, %c0_14, %c0_15] : memref<4x32x1xf32, #tpu.memory_space<vmem>>, vector<1x32x1xf32>
    %38 = vector.shape_cast %37 : vector<1x32x1xf32> to vector<32x1xf32>
    %c2_16 = arith.constant 2 : index
    %c0_17 = arith.constant 0 : index
    %c0_18 = arith.constant 0 : index
    %39 = vector.load %arg2[%c2_16, %c0_17, %c0_18] : memref<4x32x32xf32, #tpu.memory_space<vmem>>, vector<1x32x32xf32>
    %40 = vector.shape_cast %39 : vector<1x32x32xf32> to vector<32x32xf32>
    %cst_19 = arith.constant dense<0.000000e+00> : vector<32x512xf32>
    %41 = tpu.matmul %40, %36, %cst_19 {dimension_numbers = #tpu.dot_dimension_numbers<[1], [0], [0], [1], [0, 0, 1, 1], [], []>} : vector<32x32xf32>, vector<32x512xf32>, vector<32x512xf32> -> vector<32x512xf32>
    %42 = vector.broadcast %38 : vector<32x1xf32> to vector<32x512xf32>
    %43 = arith.addf %41, %42 : vector<32x512xf32>
    %44 = arith.negf %43 : vector<32x512xf32>
    %45 = math.exp %44 : vector<32x512xf32>
    %cst_20 = arith.constant 1.000000e+00 : f32
    %46 = vector.broadcast %cst_20 : f32 to vector<32x512xf32>
    %47 = arith.addf %46, %45 : vector<32x512xf32>
    %48 = arith.divf %46, %47 : vector<32x512xf32>
    %49 = arith.mulf %43, %48 : vector<32x512xf32>
    %c3 = arith.constant 3 : index
    %c0_21 = arith.constant 0 : index
    %c0_22 = arith.constant 0 : index
    %50 = vector.load %arg3[%c3, %c0_21, %c0_22] : memref<4x32x1xf32, #tpu.memory_space<vmem>>, vector<1x1x1xf32>
    %51 = vector.shape_cast %50 : vector<1x1x1xf32> to vector<1x1xf32>
    %c3_23 = arith.constant 3 : index
    %c0_24 = arith.constant 0 : index
    %c0_25 = arith.constant 0 : index
    %52 = vector.load %arg2[%c3_23, %c0_24, %c0_25] : memref<4x32x32xf32, #tpu.memory_space<vmem>>, vector<1x32x1xf32>
    %53 = vector.shape_cast %52 : vector<1x32x1xf32> to vector<32x1xf32>
    %54 = vector.broadcast %53 : vector<32x1xf32> to vector<32x512xf32>
    %55 = arith.mulf %54, %49 : vector<32x512xf32>
    %cst_26 = arith.constant dense<0.000000e+00> : vector<512xf32>
    %56 = vector.multi_reduction <add>, %55, %cst_26 [0] : vector<32x512xf32> to vector<512xf32>
    %57 = vector.shape_cast %56 : vector<512xf32> to vector<1x512xf32>
    %58 = vector.broadcast %51 : vector<1x1xf32> to vector<1x512xf32>
    %59 = arith.addf %57, %58 : vector<1x512xf32>
    %c0_27 = arith.constant 0 : index
    %c0_28 = arith.constant 0 : index
    %60 = vector.load %arg4[%c0_27, %c0_28] : memref<1x512xf32, #tpu.memory_space<vmem>>, vector<1x512xf32>
    tpu.vector_store %arg4[%c0_27, %c0_28], %59 {strides = array<i32>} : memref<1x512xf32, #tpu.memory_space<vmem>>, vector<1x512xf32>,
    return
  }
  func.func @transform_0(%arg0: i32) -> (i32, i32) {
    %c0_i32 = arith.constant 0 : i32
    %c0_i32_0 = arith.constant 0 : i32
    return %c0_i32, %arg0 : i32, i32
  }
  func.func @transform_1(%arg0: i32) -> (i32, i32, i32) {
    %c0_i32 = arith.constant 0 : i32
    %c0_i32_0 = arith.constant 0 : i32
    %c0_i32_1 = arith.constant 0 : i32
    %c0_i32_2 = arith.constant 0 : i32
    return %c0_i32, %c0_i32_0, %c0_i32_1 : i32, i32, i32
  }
  func.func @transform_2(%arg0: i32) -> (i32, i32, i32) {
    %c0_i32 = arith.constant 0 : i32
    %c0_i32_0 = arith.constant 0 : i32
    %c0_i32_1 = arith.constant 0 : i32
    %c0_i32_2 = arith.constant 0 : i32
    return %c0_i32, %c0_i32_0, %c0_i32_1 : i32, i32, i32
  }
  func.func @transform_3(%arg0: i32) -> (i32, i32) {
    %c0_i32 = arith.constant 0 : i32
    %c0_i32_0 = arith.constant 0 : i32
    return %c0_i32, %arg0 : i32, i32
  }
}

</mosaic_0001>

<llo_original>
// kernel: pinn_forward.1
$region0: #{pinn_forward.1}
  #allocation0 [shape = 'u32[]', space=smem, size = 0x4, offset = 0x4, fixed_abs, tag = 'smem constant byte address 0x4 - core index']
  #allocation1 [shape = 'u32[144,128]{1,0:T(1,128)}', space=vmem, size = 0x12000, scoped, tag = 'internal scratch']
  %s0 = inlined_call_operand.vmem [shape: f32[2,1024], index: 0, kind: input, shape index: {}]
  %s1 = inlined_call_operand.vmem [shape: f32[4,32,32], index: 1, kind: input, shape index: {}]
  %s2 = inlined_call_operand.vmem [shape: f32[4,32,1], index: 2, kind: input, shape index: {}]
  %s3 = inlined_call_operand.vmem [shape: f32[1,1024], index: 3, kind: output, shape index: {}]
  %s4 = sld [smem:[#allocation0]]
  $region45: #{pinn_forward.1} parent=0
    _
  %s6 = ssub.s32 1, %s4
  %s7 = scalar_select 0, %s6, %s4
  loop: start=0, step=1, limit=4
  $region2: #{pinn_forward.1} parent=0 // loop_pre_header
    _
  $region3: #{pinn_forward.1} parent=0 // loop_header
    %s9 = sphi 0, %s13
    %p10 = scmp.ge.s32.totalorder %s9, 4
    %s19 = sphi 0, %s21
    %s22 = sphi 0, %s19
    %s23 = sphi 0, %s22
    %s39 = sphi 0, %s23
    %s43 = sphi 0, %s43
    %s45 = sphi 0, %s43
    %s46 = sphi 0, %s45
    %s60 = sphi 0, %s46
    %s64 = sphi 0, %s64
    %s66 = sphi 0, %s64
    %s67 = sphi 0, %s66
    %s81 = sphi 0, %s67
    %s87 = sphi 0, %s89
    %s90 = sphi 0, %s87
    %s91 = sphi 0, %s90
    %s107 = sphi 0, %s91
  $region4: #{pinn_forward.1} parent=0 // loop_header_branch
    %12 = sbr.rel (%p10) target = $region8
  $region5: #{pinn_forward.1} parent=0 // loop_body
    %s14 = ssub.s32 %s9, 1
    %s15 = ssub.s32 %s9, 2
    %s16 = sadd.s32 %s9, 1
    %s17 = ssub.s32 %s9, %s16
    %p18 = scmp.eq.s32.totalorder %s17, 0
    %s20 = sadd.s32 %s19, 1
    %s21 = scalar_select %p18, %s19, %s20
    %p24 = pneg %p18
    %p25 = scmp.eq.s32.totalorder %s9, 1
    %p26 = por %p24, %p25
    %p27 = scmp.ne.s32.totalorder %s19, %s22
    %p28 = scmp.eq.s32.totalorder %s9, 0
    %p29 = por %p27, %p28
    %p30 = scmp.ne.s32.totalorder %s19, %s22
    %p31 = scmp.eq.s32.totalorder %s14, 1
    %p32 = por %p30, %p31
    %p33 = scmp.ne.s32.totalorder %s22, %s23
    %p34 = scmp.eq.s32.totalorder %s14, 0
    %p35 = por %p33, %p34
    %p36 = scmp.ne.s32.totalorder %s22, %s23
    %p37 = scmp.eq.s32.totalorder %s15, 1
    %p38 = por %p36, %p37
    %p40 = scmp.ne.s32.totalorder %s23, %s39
    %p41 = scmp.eq.s32.totalorder %s15, 0
    %p42 = por %p40, %p41
    %s44 = sadd.s32 %s43, 1
    %p47 = scmp.eq.s32.totalorder %s9, 1
    %p48 = scmp.ne.s32.totalorder %s43, %s45
    %p49 = scmp.eq.s32.totalorder %s9, 0
    %p50 = por %p48, %p49
    %p51 = scmp.ne.s32.totalorder %s43, %s45
    %p52 = scmp.eq.s32.totalorder %s14, 1
    %p53 = por %p51, %p52
    %p54 = scmp.ne.s32.totalorder %s45, %s46
    %p55 = scmp.eq.s32.totalorder %s14, 0
    %p56 = por %p54, %p55
    %p57 = scmp.ne.s32.totalorder %s45, %s46
    %p58 = scmp.eq.s32.totalorder %s15, 1
    %p59 = por %p57, %p58
    %p61 = scmp.ne.s32.totalorder %s46, %s60
    %p62 = scmp.eq.s32.totalorder %s15, 0
    %p63 = por %p61, %p62
    %s65 = sadd.s32 %s64, 1
    %p68 = scmp.eq.s32.totalorder %s9, 1
    %p69 = scmp.ne.s32.totalorder %s64, %s66
    %p70 = scmp.eq.s32.totalorder %s9, 0
    %p71 = por %p69, %p70
    %p72 = scmp.ne.s32.totalorder %s64, %s66
    %p73 = scmp.eq.s32.totalorder %s14, 1
    %p74 = por %p72, %p73
    %p75 = scmp.ne.s32.totalorder %s66, %s67
    %p76 = scmp.eq.s32.totalorder %s14, 0
    %p77 = por %p75, %p76
    %p78 = scmp.ne.s32.totalorder %s66, %s67
    %p79 = scmp.eq.s32.totalorder %s15, 1
    %p80 = por %p78, %p79
    %p82 = scmp.ne.s32.totalorder %s67, %s81
    %p83 = scmp.eq.s32.totalorder %s15, 0
    %p84 = por %p82, %p83
    %s85 = ssub.s32 %s9, %s16
    %p86 = scmp.eq.s32.totalorder %s85, 0
    %s88 = sadd.s32 %s87, 1
    %s89 = scalar_select %p86, %s87, %s88
    %p92 = pneg %p86
    %p93 = scmp.eq.s32.totalorder %s9, 1
    %p94 = por %p92, %p93
    %p95 = scmp.ne.s32.totalorder %s87, %s90
    %p96 = scmp.eq.s32.totalorder %s9, 0
    %p97 = por %p95, %p96
    %p98 = scmp.ne.s32.totalorder %s87, %s90
    %p99 = scmp.eq.s32.totalorder %s14, 1
    %p100 = por %p98, %p99
    %p101 = scmp.ne.s32.totalorder %s90, %s91
    %p102 = scmp.eq.s32.totalorder %s14, 0
    %p103 = por %p101, %p102
    %p104 = scmp.ne.s32.totalorder %s90, %s91
    %p105 = scmp.eq.s32.totalorder %s15, 1
    %p106 = por %p104, %p105
    %p108 = scmp.ne.s32.totalorder %s91, %s107
    %p109 = scmp.eq.s32.totalorder %s15, 0
    %p110 = por %p108, %p109
    %p111 = scmp.le.s32.totalorder 1, %s9
    %p112 = scmp.lt.s32.totalorder %s9, 3
    %p113 = pnand %p111, %p112
    %p114 = pneg %p113
    // Predicated region
    $region9: #{pinn_forward.1} parent=5 // pred_check
      _
    $region10: #{pinn_forward.1} parent=5 // pred_check_branch
      %116 = sbr.rel (%p113) target = $region12
    $region11: #{pinn_forward.1} parent=5 // pred_region
      %s117 = ssub.s32 %s9, 1
      // Predicated region
      $region13: #{pinn_forward.1} parent=11 // pred_check
        %p118 = pneg %p56
      $region14: #{pinn_forward.1} parent=11 // pred_check_branch
        %120 = sbr.rel (%p118) target = $region16
      $region15: #{pinn_forward.1} parent=11 // pred_region
        _
      $region16: #{pinn_forward.1} parent=11 // pred_fallthru
        _
      // Predicated region
      $region17: #{pinn_forward.1} parent=11 // pred_check
        %p121 = pneg %p77
      $region18: #{pinn_forward.1} parent=11 // pred_check_branch
        %123 = sbr.rel (%p121) target = $region20
      $region19: #{pinn_forward.1} parent=11 // pred_region
        _
      $region20: #{pinn_forward.1} parent=11 // pred_fallthru
        _
    $region12: #{pinn_forward.1} parent=5 // pred_fallthru
      _
    %p124 = scmp.lt.s32.totalorder %s9, 2
    // Predicated region
    $region21: #{pinn_forward.1} parent=5 // pred_check
      %p125 = pneg %p124
    $region22: #{pinn_forward.1} parent=5 // pred_check_branch
      %127 = sbr.rel (%p125) target = $region24
    $region23: #{pinn_forward.1} parent=5 // pred_region
      // Predicated region
      $region25: #{pinn_forward.1} parent=23 // pred_check
        %p128 = pneg %p29
      $region26: #{pinn_forward.1} parent=23 // pred_check_branch
        %130 = sbr.rel (%p128) target = $region28
      $region27: #{pinn_forward.1} parent=23 // pred_region
        %s131 = smul.u32 4, %s9
        %p132 = scmp.lt.s32.totalorder %s131, 7
        %s133 = scalar_select %p132, %s131, 7
        %s134 = smul.addr %s133, 2
        %s135 = scalar_lea.vmem %s0, %s134
        %s136 = smul.u32 4, %s9
      $region28: #{pinn_forward.1} parent=23 // pred_fallthru
        _
    $region24: #{pinn_forward.1} parent=5 // pred_fallthru
      _
    %p137 = scmp.le.s32.totalorder 1, %s9
    %p138 = scmp.lt.s32.totalorder %s9, 3
    %p139 = pnand %p137, %p138
    %p140 = pneg %p139
    // Predicated region
    $region29: #{pinn_forward.1} parent=5 // pred_check
      _
    $region30: #{pinn_forward.1} parent=5 // pred_check_branch
      %142 = sbr.rel (%p139) target = $region32
    $region31: #{pinn_forward.1} parent=5 // pred_region
      %s143 = ssub.s32 %s9, 1
      %s144 = smul.u32 4, %s14
      %p145 = scmp.lt.s32.totalorder %s144, 7
      %s146 = scalar_select %p145, %s144, 7
      %s147 = smul.addr %s146, 2
      %s148 = scalar_lea.vmem %s0, %s147
      %p149 = pneg %p35
      %p150 = pneg %p32
      %p151 = pneg %p56
      %p152 = pneg %p53
      %p153 = pneg %p77
      %p154 = pneg %p74
      %p155 = pneg %p103
      %p156 = pneg %p100
      %s157 = smul.u32 4, %s14
      %p158 = scmp.lt.s32.totalorder %s157, 7
      %s159 = scalar_select %p158, %s157, 7
      %s160 = scalar_lea.vmem %s3, %s159
      %s161 = smul.u32 4, %s14
      %p162 = scmp.lt.s32.totalorder %s161, 7
      %s163 = scalar_select %p162, %s161, 7
      %s164 = smul.addr %s163, 2
      %s165 = scalar_lea.vmem %s0, %s164
      %s166 = smul.u32 4, %s14
      %s167 = smul.u32 4, %s14
      %p168 = scmp.lt.s32.totalorder %s167, 7
      %s169 = scalar_select %p168, %s167, 7
      %s170 = scalar_lea.vmem %s3, %s169
      %s171 = smul.u32 4, %s14
      %v172 = vld [vmem:[%s165] sm:$0xff]
      %v173 = vld [vmem:[%s2] sm:$0xff]
      %v174 = vld [vmem:[%s2 + $0x8] sm:$0xff]
      %v175 = vld [vmem:[%s2 + $0x10] sm:$0xff]
      %v176 = vld [vmem:[%s2 + $0x18] sm:$0xff]
      %v177 = vld [vmem:[%s1] sm:$0xff]
      %v178 = vld [vmem:[%s1 + $0x8] sm:$0xff]
      %v179 = vld [vmem:[%s1 + $0x10] sm:$0xff]
      %v180 = vld [vmem:[%s1 + $0x18] sm:$0xff]
      %182 = vset.pattern.permute.xlu0 0
      %183 = vperm.xlu0 %182, %v177
      %v184 = vpop.permute.xlu0 %183
      %187 = vset.pattern.permute.xlu0 0
      %188 = vperm.xlu0 %187, %v178
      %v189 = vpop.permute.xlu0 %188
      %192 = vset.pattern.permute.xlu0 0
      %193 = vperm.xlu0 %192, %v179
      %v194 = vpop.permute.xlu0 %193
      %197 = vset.pattern.permute.xlu0 0
      %198 = vperm.xlu0 %197, %v180
      %v199 = vpop.permute.xlu0 %198
      %v202 = vlaneseq
      %v203 = vshrl.u32 %v202, 7
      %v204 = vsub.s32 0, %v203
      %v205 = vrot.slane %v172, %v204
      %v206 = vlaneseq
      %v207 = vshrl.u32 %v206, 7
      %v208 = vsub.s32 2, %v207
      %v209 = vrot.slane %v172, %v208
      %v210 = vlaneseq
      %v211 = vshrl.u32 %v210, 7
      %v212 = vsub.s32 4, %v211
      %v213 = vrot.slane %v172, %v212
      %v214 = vlaneseq
      %v215 = vshrl.u32 %v214, 7
      %v216 = vsub.s32 6, %v215
      %v217 = vrot.slane %v172, %v216
      %v222 = vlaneseq
      %v223 = vshrl.u32 %v222, 7
      %v224 = vsub.s32 0, %v223
      %v225 = vrot.slane %v205, %v224
      %v226 = vlaneseq
      %v227 = vshrl.u32 %v226, 7
      %v228 = vsub.s32 0, %v227
      %v229 = vrot.slane %v209, %v228
      %v230 = vlaneseq
      %v231 = vshrl.u32 %v230, 7
      %v232 = vsub.s32 0, %v231
      %v233 = vrot.slane %v213, %v232
      %v234 = vlaneseq
      %v235 = vshrl.u32 %v234, 7
      %v236 = vsub.s32 0, %v235
      %v237 = vrot.slane %v217, %v236
      %v238 = vmul.f32 %v184, %v225
      %v239 = vmul.f32 %v184, %v229
      %v240 = vmul.f32 %v184, %v233
      %v241 = vmul.f32 %v184, %v237
      %v242 = vmul.f32 %v189, %v225
      %v243 = vmul.f32 %v189, %v229
      %v244 = vmul.f32 %v189, %v233
      %v245 = vmul.f32 %v189, %v237
      %v246 = vmul.f32 %v194, %v225
      %v247 = vmul.f32 %v194, %v229
      %v248 = vmul.f32 %v194, %v233
      %v249 = vmul.f32 %v194, %v237
      %v250 = vmul.f32 %v199, %v225
      %v251 = vmul.f32 %v199, %v229
      %v252 = vmul.f32 %v199, %v233
      %v253 = vmul.f32 %v199, %v237
      %254 = vset.pattern.permute.xlu0 1
      %255 = vperm.xlu0 %254, %v177
      %v256 = vpop.permute.xlu0 %255
      %258 = vset.pattern.permute.xlu0 1
      %259 = vperm.xlu0 %258, %v178
      %v260 = vpop.permute.xlu0 %259
      %262 = vset.pattern.permute.xlu0 1
      %263 = vperm.xlu0 %262, %v179
      %v264 = vpop.permute.xlu0 %263
      %266 = vset.pattern.permute.xlu0 1
      %267 = vperm.xlu0 %266, %v180
      %v268 = vpop.permute.xlu0 %267
      %v270 = vlaneseq
      %v271 = vshrl.u32 %v270, 7
      %v272 = vsub.s32 1, %v271
      %v273 = vrot.slane %v172, %v272
      %v274 = vlaneseq
      %v275 = vshrl.u32 %v274, 7
      %v276 = vsub.s32 3, %v275
      %v277 = vrot.slane %v172, %v276
      %v278 = vlaneseq
      %v279 = vshrl.u32 %v278, 7
      %v280 = vsub.s32 5, %v279
      %v281 = vrot.slane %v172, %v280
      %v282 = vlaneseq
      %v283 = vshrl.u32 %v282, 7
      %v284 = vsub.s32 7, %v283
      %v285 = vrot.slane %v172, %v284
      %v290 = vlaneseq
      %v291 = vshrl.u32 %v290, 7
      %v292 = vsub.s32 1, %v291
      %v293 = vrot.slane %v273, %v292
      %v294 = vlaneseq
      %v295 = vshrl.u32 %v294, 7
      %v296 = vsub.s32 1, %v295
      %v297 = vrot.slane %v277, %v296
      %v298 = vlaneseq
      %v299 = vshrl.u32 %v298, 7
      %v300 = vsub.s32 1, %v299
      %v301 = vrot.slane %v281, %v300
      %v302 = vlaneseq
      %v303 = vshrl.u32 %v302, 7
      %v304 = vsub.s32 1, %v303
      %v305 = vrot.slane %v285, %v304
      %v306 = vmul.f32 %v256, %v293
      %v307 = vmul.f32 %v256, %v297
      %v308 = vmul.f32 %v256, %v301
      %v309 = vmul.f32 %v256, %v305
      %v310 = vmul.f32 %v260, %v293
      %v311 = vmul.f32 %v260, %v297
      %v312 = vmul.f32 %v260, %v301
      %v313 = vmul.f32 %v260, %v305
      %v314 = vmul.f32 %v264, %v293
      %v315 = vmul.f32 %v264, %v297
      %v316 = vmul.f32 %v264, %v301
      %v317 = vmul.f32 %v264, %v305
      %v318 = vmul.f32 %v268, %v293
      %v319 = vmul.f32 %v268, %v297
      %v320 = vmul.f32 %v268, %v301
      %v321 = vmul.f32 %v268, %v305
      %v322 = vadd.f32 %v238, %v306
      %v323 = vadd.f32 %v239, %v307
      %v324 = vadd.f32 %v240, %v308
      %v325 = vadd.f32 %v241, %v309
      %v326 = vadd.f32 %v242, %v310
      %v327 = vadd.f32 %v243, %v311
      %v328 = vadd.f32 %v244, %v312
      %v329 = vadd.f32 %v245, %v313
      %v330 = vadd.f32 %v246, %v314
      %v331 = vadd.f32 %v247, %v315
      %v332 = vadd.f32 %v248, %v316
      %v333 = vadd.f32 %v249, %v317
      %v334 = vadd.f32 %v250, %v318
      %v335 = vadd.f32 %v251, %v319
      %v336 = vadd.f32 %v252, %v320
      %v337 = vadd.f32 %v253, %v321
      %339 = vset.pattern.permute.xlu0 0
      %340 = vperm.xlu0 %339, %v173
      %v341 = vpop.permute.xlu0 %340
      %344 = vset.pattern.permute.xlu0 0
      %345 = vperm.xlu0 %344, %v174
      %v346 = vpop.permute.xlu0 %345
      %349 = vset.pattern.permute.xlu0 0
      %350 = vperm.xlu0 %349, %v175
      %v351 = vpop.permute.xlu0 %350
      %354 = vset.pattern.permute.xlu0 0
      %355 = vperm.xlu0 %354, %v176
      %v356 = vpop.permute.xlu0 %355
      %v358 = vadd.f32 %v322, %v341
      %v359 = vadd.f32 %v323, %v341
      %v360 = vadd.f32 %v324, %v341
      %v361 = vadd.f32 %v325, %v341
      %v362 = vadd.f32 %v326, %v346
      %v363 = vadd.f32 %v327, %v346
      %v364 = vadd.f32 %v328, %v346
      %v365 = vadd.f32 %v329, %v346
      %v366 = vadd.f32 %v330, %v351
      %v367 = vadd.f32 %v331, %v351
      %v368 = vadd.f32 %v332, %v351
      %v369 = vadd.f32 %v333, %v351
      %v370 = vadd.f32 %v334, %v356
      %v371 = vadd.f32 %v335, %v356
      %v372 = vadd.f32 %v336, %v356
      %v373 = vadd.f32 %v337, %v356
      %v374 = vxor.u32 %v358, 2147483648
      %v375 = vxor.u32 %v359, 2147483648
      %v376 = vxor.u32 %v360, 2147483648
      %v377 = vxor.u32 %v361, 2147483648
      %v378 = vxor.u32 %v362, 2147483648
      %v379 = vxor.u32 %v363, 2147483648
      %v380 = vxor.u32 %v364, 2147483648
      %v381 = vxor.u32 %v365, 2147483648
      %v382 = vxor.u32 %v366, 2147483648
      %v383 = vxor.u32 %v367, 2147483648
      %v384 = vxor.u32 %v368, 2147483648
      %v385 = vxor.u32 %v369, 2147483648
      %v386 = vxor.u32 %v370, 2147483648
      %v387 = vxor.u32 %v371, 2147483648
      %v388 = vxor.u32 %v372, 2147483648
      %v389 = vxor.u32 %v373, 2147483648
      %v390 = vmul.f32 %v374, 1.442695
      %v391 = vpow.pop %v390
      %v392 = vmul.f32 %v375, 1.442695
      %v393 = vpow.pop %v392
      %v394 = vmul.f32 %v376, 1.442695
      %v395 = vpow.pop %v394
      %v396 = vmul.f32 %v377, 1.442695
      %v397 = vpow.pop %v396
      %v398 = vmul.f32 %v378, 1.442695
      %v399 = vpow.pop %v398
      %v400 = vmul.f32 %v379, 1.442695
      %v401 = vpow.pop %v400
      %v402 = vmul.f32 %v380, 1.442695
      %v403 = vpow.pop %v402
      %v404 = vmul.f32 %v381, 1.442695
      %v405 = vpow.pop %v404
      %v406 = vmul.f32 %v382, 1.442695
      %v407 = vpow.pop %v406
      %v408 = vmul.f32 %v383, 1.442695
      %v409 = vpow.pop %v408
      %v410 = vmul.f32 %v384, 1.442695
      %v411 = vpow.pop %v410
      %v412 = vmul.f32 %v385, 1.442695
      %v413 = vpow.pop %v412
      %v414 = vmul.f32 %v386, 1.442695
      %v415 = vpow.pop %v414
      %v416 = vmul.f32 %v387, 1.442695
      %v417 = vpow.pop %v416
      %v418 = vmul.f32 %v388, 1.442695
      %v419 = vpow.pop %v418
      %v420 = vmul.f32 %v389, 1.442695
      %v421 = vpow.pop %v420
      %v422 = vadd.f32 %v391, 1.0
      %v423 = vadd.f32 %v393, 1.0
      %v424 = vadd.f32 %v395, 1.0
      %v425 = vadd.f32 %v397, 1.0
      %v426 = vadd.f32 %v399, 1.0
      %v427 = vadd.f32 %v401, 1.0
      %v428 = vadd.f32 %v403, 1.0
      %v429 = vadd.f32 %v405, 1.0
      %v430 = vadd.f32 %v407, 1.0
      %v431 = vadd.f32 %v409, 1.0
      %v432 = vadd.f32 %v411, 1.0
      %v433 = vadd.f32 %v413, 1.0
      %v434 = vadd.f32 %v415, 1.0
      %v435 = vadd.f32 %v417, 1.0
      %v436 = vadd.f32 %v419, 1.0
      %v437 = vadd.f32 %v421, 1.0
      %v438 = vrcp.pop %v422
      %v439 = vmul.f32 1.0, %v438
      %v440 = vrcp.pop %v423
      %v441 = vmul.f32 1.0, %v440
      %v442 = vrcp.pop %v424
      %v443 = vmul.f32 1.0, %v442
      %v444 = vrcp.pop %v425
      %v445 = vmul.f32 1.0, %v444
      %v446 = vrcp.pop %v426
      %v447 = vmul.f32 1.0, %v446
      %v448 = vrcp.pop %v427
      %v449 = vmul.f32 1.0, %v448
      %v450 = vrcp.pop %v428
      %v451 = vmul.f32 1.0, %v450
      %v452 = vrcp.pop %v429
      %v453 = vmul.f32 1.0, %v452
      %v454 = vrcp.pop %v430
      %v455 = vmul.f32 1.0, %v454
      %v456 = vrcp.pop %v431
      %v457 = vmul.f32 1.0, %v456
      %v458 = vrcp.pop %v432
      %v459 = vmul.f32 1.0, %v458
      %v460 = vrcp.pop %v433
      %v461 = vmul.f32 1.0, %v460
      %v462 = vrcp.pop %v434
      %v463 = vmul.f32 1.0, %v462
      %v464 = vrcp.pop %v435
      %v465 = vmul.f32 1.0, %v464
      %v466 = vrcp.pop %v436
      %v467 = vmul.f32 1.0, %v466
      %v468 = vrcp.pop %v437
      %v469 = vmul.f32 1.0, %v468
      %v470 = vmul.f32 %v358, %v439
      %v471 = vmul.f32 %v359, %v441
      %v472 = vmul.f32 %v360, %v443
      %v473 = vmul.f32 %v361, %v445
      %v474 = vmul.f32 %v362, %v447
      %v475 = vmul.f32 %v363, %v449
      %v476 = vmul.f32 %v364, %v451
      %v477 = vmul.f32 %v365, %v453
      %v478 = vmul.f32 %v366, %v455
      %v479 = vmul.f32 %v367, %v457
      %v480 = vmul.f32 %v368, %v459
      %v481 = vmul.f32 %v369, %v461
      %v482 = vmul.f32 %v370, %v463
      %v483 = vmul.f32 %v371, %v465
      %v484 = vmul.f32 %v372, %v467
      %v485 = vmul.f32 %v373, %v469
      %s486 = scalar_lea.vmem %s2, 32
      %v487 = vld [vmem:[%s486] sm:$0xff]
      %v488 = vld [vmem:[%s486 + $0x8] sm:$0xff]
      %v489 = vld [vmem:[%s486 + $0x10] sm:$0xff]
      %v490 = vld [vmem:[%s486 + $0x18] sm:$0xff]
      %s491 = scalar_lea.vmem %s1, 32
      %v492 = vld [vmem:[%s491] sm:$0xff]
      %v493 = vld [vmem:[%s491 + $0x8] sm:$0xff]
      %v494 = vld [vmem:[%s491 + $0x10] sm:$0xff]
      %v495 = vld [vmem:[%s491 + $0x18] sm:$0xff]
      %497 = vset.pattern.permute.xlu0 0
      %498 = vperm.xlu0 %497, %v487
      %v499 = vpop.permute.xlu0 %498
      %502 = vset.pattern.permute.xlu0 0
      %503 = vperm.xlu0 %502, %v488
      %v504 = vpop.permute.xlu0 %503
      %507 = vset.pattern.permute.xlu0 0
      %508 = vperm.xlu0 %507, %v489
      %v509 = vpop.permute.xlu0 %508
      %512 = vset.pattern.permute.xlu0 0
      %513 = vperm.xlu0 %512, %v490
      %v514 = vpop.permute.xlu0 %513
      %vm516 = vcmask 261120
      %v518 = vsel %vm516, %v492, 0
      %v521 = vsel %vm516, %v493, 0
      %v524 = vsel %vm516, %v494, 0
      %v527 = vsel %vm516, %v495, 0
      %529 = vmatprep.subr.mxu0 %v471
      %530 = vmatpush1.msra.mxu0 %v470
      %531 = vmatprep.subr.mxu0 %v475
      %532 = vmatpush1.msra.mxu0 %v474
      %533 = vmatprep.subr.mxu0 %v479
      %534 = vmatpush1.msra.mxu0 %v478
      %535 = vmatprep.subr.mxu0 %v483
      %536 = vmatpush1.msra.mxu0 %v482
      %537 = vmatprep.subr.mxu0 0.0
      %538 = vmatpush1.msra.mxu0 0.0
      %539 = vmatprep.subr.mxu0 0.0
      %540 = vmatpush1.msra.mxu0 0.0
      %541 = vmatprep.subr.mxu0 0.0
      %542 = vmatpush1.msra.mxu0 0.0
      %543 = vmatprep.subr.mxu0 0.0
      %544 = vmatpush1.msra.mxu0 0.0
      %545 = vmatprep.subr.mxu0 0.0
      %546 = vmatpush1.msra.mxu0 0.0
      %547 = vmatprep.subr.mxu0 0.0
      %548 = vmatpush1.msra.mxu0 0.0
      %549 = vmatprep.subr.mxu0 0.0
      %550 = vmatpush1.msra.mxu0 0.0
      %551 = vmatprep.subr.mxu0 0.0
      %552 = vmatpush1.msra.mxu0 0.0
      %553 = vmatprep.subr.mxu0 0.0
      %554 = vmatpush1.msra.mxu0 0.0
      %555 = vmatprep.subr.mxu0 0.0
      %556 = vmatpush1.msra.mxu0 0.0
      %557 = vmatprep.subr.mxu0 0.0
      %558 = vmatpush1.msra.mxu0 0.0
      %559 = vmatprep.subr.mxu0 0.0
      %560 = vmatpush1.msra.mxu0 0.0
      %561 = vmatprep.subr.mxu0 0.0
      %562 = vmatpush1.msra.mxu0 0.0
      %563 = vmatprep.subr.mxu0 0.0
      %564 = vmatpush1.msra.mxu0 0.0
      %565 = vmatprep.subr.mxu0 0.0
      %566 = vmatpush1.msra.mxu0 0.0
      %567 = vmatprep.subr.mxu0 0.0
      %568 = vmatpush1.msra.mxu0 0.0
      %569 = vmatprep.subr.mxu0 0.0
      %570 = vmatpush1.msra.mxu0 0.0
      %571 = vmatprep.subr.mxu0 0.0
      %572 = vmatpush1.msra.mxu0 0.0
      %573 = vmatprep.subr.mxu0 0.0
      %574 = vmatpush1.msra.mxu0 0.0
      %575 = vmatprep.subr.mxu0 0.0
      %576 = vmatpush1.msra.mxu0 0.0
      %577 = vmatprep.subr.mxu0 0.0
      %578 = vmatpush1.msra.mxu0 0.0
      %579 = vmatprep.subr.mxu0 0.0
      %580 = vmatpush1.msra.mxu0 0.0
      %581 = vmatprep.subr.mxu0 0.0
      %582 = vmatpush1.msra.mxu0 0.0
      %583 = vmatprep.subr.mxu0 0.0
      %584 = vmatpush1.msra.mxu0 0.0
      %585 = vmatprep.subr.mxu0 0.0
      %586 = vmatpush1.msra.mxu0 0.0
      %587 = vmatprep.subr.mxu0 0.0
      %588 = vmatpush1.msra.mxu0 0.0
      %589 = vmatprep.subr.mxu0 0.0
      %590 = vmatpush1.msra.mxu0 0.0
      %591 = vmatprep.subr.mxu0 0.0
      %592 = vmatpush1.msra.mxu0 0.0
      %593 = vmatprep.mubr.f32.mxu0 0.0
      %594 = vmatmul.mubr.f32.gmra.mrb[0].mxu0 %v518
      %v595 = vpop.f32.mrb[0].mxu0
      %v596 = vadd.f32 %v499, %v595
      %v597 = vpop.f32.mrb[0].mxu0
      %v598 = vadd.f32 %v499, %v597
      %599 = vmatprep.mubr.f32.mxu0 0.0
      %600 = vmatmul.mubr.f32.gmra.mrb[0].mxu0 %v521
      %v601 = vpop.f32.mrb[0].mxu0
      %v602 = vadd.f32 %v504, %v601
      %v603 = vpop.f32.mrb[0].mxu0
      %v604 = vadd.f32 %v504, %v603
      %605 = vmatprep.mubr.f32.mxu0 0.0
      %606 = vmatmul.mubr.f32.gmra.mrb[0].mxu0 %v524
      %v607 = vpop.f32.mrb[0].mxu0
      %v608 = vadd.f32 %v509, %v607
      %v609 = vpop.f32.mrb[0].mxu0
      %v610 = vadd.f32 %v509, %v609
      %611 = vmatprep.mubr.f32.mxu0 0.0
      %612 = vmatmul.mubr.f32.gmra.mrb[0].mxu0 %v527
      %v613 = vpop.f32.mrb[0].mxu0
      %v614 = vadd.f32 %v514, %v613
      %v615 = vpop.f32.mrb[0].mxu0
      %v616 = vadd.f32 %v514, %v615
      %617 = vdwg.mxu0
      %618 = vmatprep.subr.mxu0 %v473
      %619 = vmatpush1.msra.mxu0 %v472
      %620 = vmatprep.subr.mxu0 %v477
      %621 = vmatpush1.msra.mxu0 %v476
      %622 = vmatprep.subr.mxu0 %v481
      %623 = vmatpush1.msra.mxu0 %v480
      %624 = vmatprep.subr.mxu0 %v485
      %625 = vmatpush1.msra.mxu0 %v484
      %626 = vmatprep.subr.mxu0 0.0
      %627 = vmatpush1.msra.mxu0 0.0
      %628 = vmatprep.subr.mxu0 0.0
      %629 = vmatpush1.msra.mxu0 0.0
      %630 = vmatprep.subr.mxu0 0.0
      %631 = vmatpush1.msra.mxu0 0.0
      %632 = vmatprep.subr.mxu0 0.0
      %633 = vmatpush1.msra.mxu0 0.0
      %634 = vmatprep.subr.mxu0 0.0
      %635 = vmatpush1.msra.mxu0 0.0
      %636 = vmatprep.subr.mxu0 0.0
      %637 = vmatpush1.msra.mxu0 0.0
      %638 = vmatprep.subr.mxu0 0.0
      %639 = vmatpush1.msra.mxu0 0.0
      %640 = vmatprep.subr.mxu0 0.0
      %641 = vmatpush1.msra.mxu0 0.0
      %642 = vmatprep.subr.mxu0 0.0
      %643 = vmatpush1.msra.mxu0 0.0
      %644 = vmatprep.subr.mxu0 0.0
      %645 = vmatpush1.msra.mxu0 0.0
      %646 = vmatprep.subr.mxu0 0.0
      %647 = vmatpush1.msra.mxu0 0.0
      %648 = vmatprep.subr.mxu0 0.0
      %649 = vmatpush1.msra.mxu0 0.0
      %650 = vmatprep.subr.mxu0 0.0
      %651 = vmatpush1.msra.mxu0 0.0
      %652 = vmatprep.subr.mxu0 0.0
      %653 = vmatpush1.msra.mxu0 0.0
      %654 = vmatprep.subr.mxu0 0.0
      %655 = vmatpush1.msra.mxu0 0.0
      %656 = vmatprep.subr.mxu0 0.0
      %657 = vmatpush1.msra.mxu0 0.0
      %658 = vmatprep.subr.mxu0 0.0
      %659 = vmatpush1.msra.mxu0 0.0
      %660 = vmatprep.subr.mxu0 0.0
      %661 = vmatpush1.msra.mxu0 0.0
      %662 = vmatprep.subr.mxu0 0.0
      %663 = vmatpush1.msra.mxu0 0.0
      %664 = vmatprep.subr.mxu0 0.0
      %665 = vmatpush1.msra.mxu0 0.0
      %666 = vmatprep.subr.mxu0 0.0
      %667 = vmatpush1.msra.mxu0 0.0
      %668 = vmatprep.subr.mxu0 0.0
      %669 = vmatpush1.msra.mxu0 0.0
      %670 = vmatprep.subr.mxu0 0.0
      %671 = vmatpush1.msra.mxu0 0.0
      %672 = vmatprep.subr.mxu0 0.0
      %673 = vmatpush1.msra.mxu0 0.0
      %674 = vmatprep.subr.mxu0 0.0
      %675 = vmatpush1.msra.mxu0 0.0
      %676 = vmatprep.subr.mxu0 0.0
      %677 = vmatpush1.msra.mxu0 0.0
      %678 = vmatprep.subr.mxu0 0.0
      %679 = vmatpush1.msra.mxu0 0.0
      %680 = vmatprep.subr.mxu0 0.0
      %681 = vmatpush1.msra.mxu0 0.0
      %682 = vmatprep.mubr.f32.mxu0 0.0
      %683 = vmatmul.mubr.f32.gmra.mrb[0].mxu0 %v518
      %v684 = vpop.f32.mrb[0].mxu0
      %v685 = vadd.f32 %v499, %v684
      %v686 = vpop.f32.mrb[0].mxu0
      %v687 = vadd.f32 %v499, %v686
      %688 = vmatprep.mubr.f32.mxu0 0.0
      %689 = vmatmul.mubr.f32.gmra.mrb[0].mxu0 %v521
      %v690 = vpop.f32.mrb[0].mxu0
      %v691 = vadd.f32 %v504, %v690
      %v692 = vpop.f32.mrb[0].mxu0
      %v693 = vadd.f32 %v504, %v692
      %694 = vmatprep.mubr.f32.mxu0 0.0
      %695 = vmatmul.mubr.f32.gmra.mrb[0].mxu0 %v524
      %v696 = vpop.f32.mrb[0].mxu0
      %v697 = vadd.f32 %v509, %v696
      %v698 = vpop.f32.mrb[0].mxu0
      %v699 = vadd.f32 %v509, %v698
      %700 = vmatprep.mubr.f32.mxu0 0.0
      %701 = vmatmul.mubr.f32.gmra.mrb[0].mxu0 %v527
      %v702 = vpop.f32.mrb[0].mxu0
      %v703 = vadd.f32 %v514, %v702
      %v704 = vpop.f32.mrb[0].mxu0
      %v705 = vadd.f32 %v514, %v704
      %706 = vdwg.mxu0
      %v707 = vxor.u32 %v596, 2147483648
      %v708 = vxor.u32 %v598, 2147483648
      %v709 = vxor.u32 %v685, 2147483648
      %v710 = vxor.u32 %v687, 2147483648
      %v711 = vxor.u32 %v602, 2147483648
      %v712 = vxor.u32 %v604, 2147483648
      %v713 = vxor.u32 %v691, 2147483648
      %v714 = vxor.u32 %v693, 2147483648
      %v715 = vxor.u32 %v608, 2147483648
      %v716 = vxor.u32 %v610, 2147483648
      %v717 = vxor.u32 %v697, 2147483648
      %v718 = vxor.u32 %v699, 2147483648
      %v719 = vxor.u32 %v614, 2147483648
      %v720 = vxor.u32 %v616, 2147483648
      %v721 = vxor.u32 %v703, 2147483648
      %v722 = vxor.u32 %v705, 2147483648
      %v723 = vmul.f32 %v707, 1.442695
      %v724 = vpow.pop %v723
      %v725 = vmul.f32 %v708, 1.442695
      %v726 = vpow.pop %v725
      %v727 = vmul.f32 %v709, 1.442695
      %v728 = vpow.pop %v727
      %v729 = vmul.f32 %v710, 1.442695
      %v730 = vpow.pop %v729
      %v731 = vmul.f32 %v711, 1.442695
      %v732 = vpow.pop %v731
      %v733 = vmul.f32 %v712, 1.442695
      %v734 = vpow.pop %v733
      %v735 = vmul.f32 %v713, 1.442695
      %v736 = vpow.pop %v735
      %v737 = vmul.f32 %v714, 1.442695
      %v738 = vpow.pop %v737
      %v739 = vmul.f32 %v715, 1.442695
      %v740 = vpow.pop %v739
      %v741 = vmul.f32 %v716, 1.442695
      %v742 = vpow.pop %v741
      %v743 = vmul.f32 %v717, 1.442695
      %v744 = vpow.pop %v743
      %v745 = vmul.f32 %v718, 1.442695
      %v746 = vpow.pop %v745
      %v747 = vmul.f32 %v719, 1.442695
      %v748 = vpow.pop %v747
      %v749 = vmul.f32 %v720, 1.442695
      %v750 = vpow.pop %v749
      %v751 = vmul.f32 %v721, 1.442695
      %v752 = vpow.pop %v751
      %v753 = vmul.f32 %v722, 1.442695
      %v754 = vpow.pop %v753
      %v755 = vadd.f32 %v724, 1.0
      %v756 = vadd.f32 %v726, 1.0
      %v757 = vadd.f32 %v728, 1.0
      %v758 = vadd.f32 %v730, 1.0
      %v759 = vadd.f32 %v732, 1.0
      %v760 = vadd.f32 %v734, 1.0
      %v761 = vadd.f32 %v736, 1.0
      %v762 = vadd.f32 %v738, 1.0
      %v763 = vadd.f32 %v740, 1.0
      %v764 = vadd.f32 %v742, 1.0
      %v765 = vadd.f32 %v744, 1.0
      %v766 = vadd.f32 %v746, 1.0
      %v767 = vadd.f32 %v748, 1.0
      %v768 = vadd.f32 %v750, 1.0
      %v769 = vadd.f32 %v752, 1.0
      %v770 = vadd.f32 %v754, 1.0
      %v771 = vrcp.pop %v755
      %v772 = vmul.f32 1.0, %v771
      %v773 = vrcp.pop %v756
      %v774 = vmul.f32 1.0, %v773
      %v775 = vrcp.pop %v757
      %v776 = vmul.f32 1.0, %v775
      %v777 = vrcp.pop %v758
      %v778 = vmul.f32 1.0, %v777
      %v779 = vrcp.pop %v759
      %v780 = vmul.f32 1.0, %v779
      %v781 = vrcp.pop %v760
      %v782 = vmul.f32 1.0, %v781
      %v783 = vrcp.pop %v761
      %v784 = vmul.f32 1.0, %v783
      %v785 = vrcp.pop %v762
      %v786 = vmul.f32 1.0, %v785
      %v787 = vrcp.pop %v763
      %v788 = vmul.f32 1.0, %v787
      %v789 = vrcp.pop %v764
      %v790 = vmul.f32 1.0, %v789
      %v791 = vrcp.pop %v765
      %v792 = vmul.f32 1.0, %v791
      %v793 = vrcp.pop %v766
      %v794 = vmul.f32 1.0, %v793
      %v795 = vrcp.pop %v767
      %v796 = vmul.f32 1.0, %v795
      %v797 = vrcp.pop %v768
      %v798 = vmul.f32 1.0, %v797
      %v799 = vrcp.pop %v769
      %v800 = vmul.f32 1.0, %v799
      %v801 = vrcp.pop %v770
      %v802 = vmul.f32 1.0, %v801
      %v803 = vmul.f32 %v596, %v772
      %v804 = vmul.f32 %v598, %v774
      %v805 = vmul.f32 %v685, %v776
      %v806 = vmul.f32 %v687, %v778
      %v807 = vmul.f32 %v602, %v780
      %v808 = vmul.f32 %v604, %v782
      %v809 = vmul.f32 %v691, %v784
      %v810 = vmul.f32 %v693, %v786
      %v811 = vmul.f32 %v608, %v788
      %v812 = vmul.f32 %v610, %v790
      %v813 = vmul.f32 %v697, %v792
      %v814 = vmul.f32 %v699, %v794
      %v815 = vmul.f32 %v614, %v796
      %v816 = vmul.f32 %v616, %v798
      %v817 = vmul.f32 %v703, %v800
      %v818 = vmul.f32 %v705, %v802
      %s819 = scalar_lea.vmem %s2, 64
      %v820 = vld [vmem:[%s819] sm:$0xff]
      %v821 = vld [vmem:[%s819 + $0x8] sm:$0xff]
      %v822 = vld [vmem:[%s819 + $0x10] sm:$0xff]
      %v823 = vld [vmem:[%s819 + $0x18] sm:$0xff]
      %s824 = scalar_lea.vmem %s1, 64
      %v825 = vld [vmem:[%s824] sm:$0xff]
      %v826 = vld [vmem:[%s824 + $0x8] sm:$0xff]
      %v827 = vld [vmem:[%s824 + $0x10] sm:$0xff]
      %v828 = vld [vmem:[%s824 + $0x18] sm:$0xff]
      %830 = vset.pattern.permute.xlu0 0
      %831 = vperm.xlu0 %830, %v820
      %v832 = vpop.permute.xlu0 %831
      %835 = vset.pattern.permute.xlu0 0
      %836 = vperm.xlu0 %835, %v821
      %v837 = vpop.permute.xlu0 %836
      %840 = vset.pattern.permute.xlu0 0
      %841 = vperm.xlu0 %840, %v822
      %v842 = vpop.permute.xlu0 %841
      %845 = vset.pattern.permute.xlu0 0
      %846 = vperm.xlu0 %845, %v823
      %v847 = vpop.permute.xlu0 %846
      %v850 = vsel %vm516, %v825, 0
      %v853 = vsel %vm516, %v826, 0
      %v856 = vsel %vm516, %v827, 0
      %v859 = vsel %vm516, %v828, 0
      %861 = vmatprep.subr.mxu0 %v804
      %862 = vmatpush1.msra.mxu0 %v803
      %863 = vmatprep.subr.mxu0 %v808
      %864 = vmatpush1.msra.mxu0 %v807
      %865 = vmatprep.subr.mxu0 %v812
      %866 = vmatpush1.msra.mxu0 %v811
      %867 = vmatprep.subr.mxu0 %v816
      %868 = vmatpush1.msra.mxu0 %v815
      %869 = vmatprep.subr.mxu0 0.0
      %870 = vmatpush1.msra.mxu0 0.0
      %871 = vmatprep.subr.mxu0 0.0
      %872 = vmatpush1.msra.mxu0 0.0
      %873 = vmatprep.subr.mxu0 0.0
      %874 = vmatpush1.msra.mxu0 0.0
      %875 = vmatprep.subr.mxu0 0.0
      %876 = vmatpush1.msra.mxu0 0.0
      %877 = vmatprep.subr.mxu0 0.0
      %878 = vmatpush1.msra.mxu0 0.0
      %879 = vmatprep.subr.mxu0 0.0
      %880 = vmatpush1.msra.mxu0 0.0
      %881 = vmatprep.subr.mxu0 0.0
      %882 = vmatpush1.msra.mxu0 0.0
      %883 = vmatprep.subr.mxu0 0.0
      %884 = vmatpush1.msra.mxu0 0.0
      %885 = vmatprep.subr.mxu0 0.0
      %886 = vmatpush1.msra.mxu0 0.0
      %887 = vmatprep.subr.mxu0 0.0
      %888 = vmatpush1.msra.mxu0 0.0
      %889 = vmatprep.subr.mxu0 0.0
      %890 = vmatpush1.msra.mxu0 0.0
      %891 = vmatprep.subr.mxu0 0.0
      %892 = vmatpush1.msra.mxu0 0.0
      %893 = vmatprep.subr.mxu0 0.0
      %894 = vmatpush1.msra.mxu0 0.0
      %895 = vmatprep.subr.mxu0 0.0
      %896 = vmatpush1.msra.mxu0 0.0
      %897 = vmatprep.subr.mxu0 0.0
      %898 = vmatpush1.msra.mxu0 0.0
      %899 = vmatprep.subr.mxu0 0.0
      %900 = vmatpush1.msra.mxu0 0.0
      %901 = vmatprep.subr.mxu0 0.0
      %902 = vmatpush1.msra.mxu0 0.0
      %903 = vmatprep.subr.mxu0 0.0
      %904 = vmatpush1.msra.mxu0 0.0
      %905 = vmatprep.subr.mxu0 0.0
      %906 = vmatpush1.msra.mxu0 0.0
      %907 = vmatprep.subr.mxu0 0.0
      %908 = vmatpush1.msra.mxu0 0.0
      %909 = vmatprep.subr.mxu0 0.0
      %910 = vmatpush1.msra.mxu0 0.0
      %911 = vmatprep.subr.mxu0 0.0
      %912 = vmatpush1.msra.mxu0 0.0
      %913 = vmatprep.subr.mxu0 0.0
      %914 = vmatpush1.msra.mxu0 0.0
      %915 = vmatprep.subr.mxu0 0.0
      %916 = vmatpush1.msra.mxu0 0.0
      %917 = vmatprep.subr.mxu0 0.0
      %918 = vmatpush1.msra.mxu0 0.0
      %919 = vmatprep.subr.mxu0 0.0
      %920 = vmatpush1.msra.mxu0 0.0
      %921 = vmatprep.subr.mxu0 0.0
      %922 = vmatpush1.msra.mxu0 0.0
      %923 = vmatprep.subr.mxu0 0.0
      %924 = vmatpush1.msra.mxu0 0.0
      %925 = vmatprep.mubr.f32.mxu0 0.0
      %926 = vmatmul.mubr.f32.gmra.mrb[0].mxu0 %v850
      %v927 = vpop.f32.mrb[0].mxu0
      %v928 = vadd.f32 %v832, %v927
      %v929 = vpop.f32.mrb[0].mxu0
      %v930 = vadd.f32 %v832, %v929
      %931 = vmatprep.mubr.f32.mxu0 0.0
      %932 = vmatmul.mubr.f32.gmra.mrb[0].mxu0 %v853
      %v933 = vpop.f32.mrb[0].mxu0
      %v934 = vadd.f32 %v837, %v933
      %v935 = vpop.f32.mrb[0].mxu0
      %v936 = vadd.f32 %v837, %v935
      %937 = vmatprep.mubr.f32.mxu0 0.0
      %938 = vmatmul.mubr.f32.gmra.mrb[0].mxu0 %v856
      %v939 = vpop.f32.mrb[0].mxu0
      %v940 = vadd.f32 %v842, %v939
      %v941 = vpop.f32.mrb[0].mxu0
      %v942 = vadd.f32 %v842, %v941
      %943 = vmatprep.mubr.f32.mxu0 0.0
      %944 = vmatmul.mubr.f32.gmra.mrb[0].mxu0 %v859
      %v945 = vpop.f32.mrb[0].mxu0
      %v946 = vadd.f32 %v847, %v945
      %v947 = vpop.f32.mrb[0].mxu0
      %v948 = vadd.f32 %v847, %v947
      %949 = vdwg.mxu0
      %950 = vmatprep.subr.mxu0 %v806
      %951 = vmatpush1.msra.mxu0 %v805
      %952 = vmatprep.subr.mxu0 %v810
      %953 = vmatpush1.msra.mxu0 %v809
      %954 = vmatprep.subr.mxu0 %v814
      %955 = vmatpush1.msra.mxu0 %v813
      %956 = vmatprep.subr.mxu0 %v818
      %957 = vmatpush1.msra.mxu0 %v817
      %958 = vmatprep.subr.mxu0 0.0
      %959 = vmatpush1.msra.mxu0 0.0
      %960 = vmatprep.subr.mxu0 0.0
      %961 = vmatpush1.msra.mxu0 0.0
      %962 = vmatprep.subr.mxu0 0.0
      %963 = vmatpush1.msra.mxu0 0.0
      %964 = vmatprep.subr.mxu0 0.0
      %965 = vmatpush1.msra.mxu0 0.0
      %966 = vmatprep.subr.mxu0 0.0
      %967 = vmatpush1.msra.mxu0 0.0
      %968 = vmatprep.subr.mxu0 0.0
      %969 = vmatpush1.msra.mxu0 0.0
      %970 = vmatprep.subr.mxu0 0.0
      %971 = vmatpush1.msra.mxu0 0.0
      %972 = vmatprep.subr.mxu0 0.0
      %973 = vmatpush1.msra.mxu0 0.0
      %974 = vmatprep.subr.mxu0 0.0
      %975 = vmatpush1.msra.mxu0 0.0
      %976 = vmatprep.subr.mxu0 0.0
      %977 = vmatpush1.msra.mxu0 0.0
      %978 = vmatprep.subr.mxu0 0.0
      %979 = vmatpush1.msra.mxu0 0.0
      %980 = vmatprep.subr.mxu0 0.0
      %981 = vmatpush1.msra.mxu0 0.0
      %982 = vmatprep.subr.mxu0 0.0
      %983 = vmatpush1.msra.mxu0 0.0
      %984 = vmatprep.subr.mxu0 0.0
      %985 = vmatpush1.msra.mxu0 0.0
      %986 = vmatprep.subr.mxu0 0.0
      %987 = vmatpush1.msra.mxu0 0.0
      %988 = vmatprep.subr.mxu0 0.0
      %989 = vmatpush1.msra.mxu0 0.0
      %990 = vmatprep.subr.mxu0 0.0
      %991 = vmatpush1.msra.mxu0 0.0
      %992 = vmatprep.subr.mxu0 0.0
      %993 = vmatpush1.msra.mxu0 0.0
      %994 = vmatprep.subr.mxu0 0.0
      %995 = vmatpush1.msra.mxu0 0.0
      %996 = vmatprep.subr.mxu0 0.0
      %997 = vmatpush1.msra.mxu0 0.0
      %998 = vmatprep.subr.mxu0 0.0
      %999 = vmatpush1.msra.mxu0 0.0
      %1000 = vmatprep.subr.mxu0 0.0
      %1001 = vmatpush1.msra.mxu0 0.0
      %1002 = vmatprep.subr.mxu0 0.0
      %1003 = vmatpush1.msra.mxu0 0.0
      %1004 = vmatprep.subr.mxu0 0.0
      %1005 = vmatpush1.msra.mxu0 0.0
      %1006 = vmatprep.subr.mxu0 0.0
      %1007 = vmatpush1.msra.mxu0 0.0
      %1008 = vmatprep.subr.mxu0 0.0
      %1009 = vmatpush1.msra.mxu0 0.0
      %1010 = vmatprep.subr.mxu0 0.0
      %1011 = vmatpush1.msra.mxu0 0.0
      %1012 = vmatprep.subr.mxu0 0.0
      %1013 = vmatpush1.msra.mxu0 0.0
      %1014 = vmatprep.mubr.f32.mxu0 0.0
      %1015 = vmatmul.mubr.f32.gmra.mrb[0].mxu0 %v850
      %v1016 = vpop.f32.mrb[0].mxu0
      %v1017 = vadd.f32 %v832, %v1016
      %v1018 = vpop.f32.mrb[0].mxu0
      %v1019 = vadd.f32 %v832, %v1018
      %1020 = vmatprep.mubr.f32.mxu0 0.0
      %1021 = vmatmul.mubr.f32.gmra.mrb[0].mxu0 %v853
      %v1022 = vpop.f32.mrb[0].mxu0
      %v1023 = vadd.f32 %v837, %v1022
      %v1024 = vpop.f32.mrb[0].mxu0
      %v1025 = vadd.f32 %v837, %v1024
      %1026 = vmatprep.mubr.f32.mxu0 0.0
      %1027 = vmatmul.mubr.f32.gmra.mrb[0].mxu0 %v856
      %v1028 = vpop.f32.mrb[0].mxu0
      %v1029 = vadd.f32 %v842, %v1028
      %v1030 = vpop.f32.mrb[0].mxu0
      %v1031 = vadd.f32 %v842, %v1030
      %1032 = vmatprep.mubr.f32.mxu0 0.0
      %1033 = vmatmul.mubr.f32.gmra.mrb[0].mxu0 %v859
      %v1034 = vpop.f32.mrb[0].mxu0
      %v1035 = vadd.f32 %v847, %v1034
      %v1036 = vpop.f32.mrb[0].mxu0
      %v1037 = vadd.f32 %v847, %v1036
      %1038 = vdwg.mxu0
      %v1039 = vxor.u32 %v928, 2147483648
      %v1040 = vxor.u32 %v930, 2147483648
      %v1041 = vxor.u32 %v1017, 2147483648
      %v1042 = vxor.u32 %v1019, 2147483648
      %v1043 = vxor.u32 %v934, 2147483648
      %v1044 = vxor.u32 %v936, 2147483648
      %v1045 = vxor.u32 %v1023, 2147483648
      %v1046 = vxor.u32 %v1025, 2147483648
      %v1047 = vxor.u32 %v940, 2147483648
      %v1048 = vxor.u32 %v942, 2147483648
      %v1049 = vxor.u32 %v1029, 2147483648
      %v1050 = vxor.u32 %v1031, 2147483648
      %v1051 = vxor.u32 %v946, 2147483648
      %v1052 = vxor.u32 %v948, 2147483648
      %v1053 = vxor.u32 %v1035, 2147483648
      %v1054 = vxor.u32 %v1037, 2147483648
      %v1055 = vmul.f32 %v1039, 1.442695
      %v1056 = vpow.pop %v1055
      %v1057 = vmul.f32 %v1040, 1.442695
      %v1058 = vpow.pop %v1057
      %v1059 = vmul.f32 %v1041, 1.442695
      %v1060 = vpow.pop %v1059
      %v1061 = vmul.f32 %v1042, 1.442695
      %v1062 = vpow.pop %v1061
      %v1063 = vmul.f32 %v1043, 1.442695
      %v1064 = vpow.pop %v1063
      %v1065 = vmul.f32 %v1044, 1.442695
      %v1066 = vpow.pop %v1065
      %v1067 = vmul.f32 %v1045, 1.442695
      %v1068 = vpow.pop %v1067
      %v1069 = vmul.f32 %v1046, 1.442695
      %v1070 = vpow.pop %v1069
      %v1071 = vmul.f32 %v1047, 1.442695
      %v1072 = vpow.pop %v1071
      %v1073 = vmul.f32 %v1048, 1.442695
      %v1074 = vpow.pop %v1073
      %v1075 = vmul.f32 %v1049, 1.442695
      %v1076 = vpow.pop %v1075
      %v1077 = vmul.f32 %v1050, 1.442695
      %v1078 = vpow.pop %v1077
      %v1079 = vmul.f32 %v1051, 1.442695
      %v1080 = vpow.pop %v1079
      %v1081 = vmul.f32 %v1052, 1.442695
      %v1082 = vpow.pop %v1081
      %v1083 = vmul.f32 %v1053, 1.442695
      %v1084 = vpow.pop %v1083
      %v1085 = vmul.f32 %v1054, 1.442695
      %v1086 = vpow.pop %v1085
      %v1087 = vadd.f32 %v1056, 1.0
      %v1088 = vadd.f32 %v1058, 1.0
      %v1089 = vadd.f32 %v1060, 1.0
      %v1090 = vadd.f32 %v1062, 1.0
      %v1091 = vadd.f32 %v1064, 1.0
      %v1092 = vadd.f32 %v1066, 1.0
      %v1093 = vadd.f32 %v1068, 1.0
      %v1094 = vadd.f32 %v1070, 1.0
      %v1095 = vadd.f32 %v1072, 1.0
      %v1096 = vadd.f32 %v1074, 1.0
      %v1097 = vadd.f32 %v1076, 1.0
      %v1098 = vadd.f32 %v1078, 1.0
      %v1099 = vadd.f32 %v1080, 1.0
      %v1100 = vadd.f32 %v1082, 1.0
      %v1101 = vadd.f32 %v1084, 1.0
      %v1102 = vadd.f32 %v1086, 1.0
      %v1103 = vrcp.pop %v1087
      %v1104 = vmul.f32 1.0, %v1103
      %v1105 = vrcp.pop %v1088
      %v1106 = vmul.f32 1.0, %v1105
      %v1107 = vrcp.pop %v1089
      %v1108 = vmul.f32 1.0, %v1107
      %v1109 = vrcp.pop %v1090
      %v1110 = vmul.f32 1.0, %v1109
      %v1111 = vrcp.pop %v1091
      %v1112 = vmul.f32 1.0, %v1111
      %v1113 = vrcp.pop %v1092
      %v1114 = vmul.f32 1.0, %v1113
      %v1115 = vrcp.pop %v1093
      %v1116 = vmul.f32 1.0, %v1115
      %v1117 = vrcp.pop %v1094
      %v1118 = vmul.f32 1.0, %v1117
      %v1119 = vrcp.pop %v1095
      %v1120 = vmul.f32 1.0, %v1119
      %v1121 = vrcp.pop %v1096
      %v1122 = vmul.f32 1.0, %v1121
      %v1123 = vrcp.pop %v1097
      %v1124 = vmul.f32 1.0, %v1123
      %v1125 = vrcp.pop %v1098
      %v1126 = vmul.f32 1.0, %v1125
      %v1127 = vrcp.pop %v1099
      %v1128 = vmul.f32 1.0, %v1127
      %v1129 = vrcp.pop %v1100
      %v1130 = vmul.f32 1.0, %v1129
      %v1131 = vrcp.pop %v1101
      %v1132 = vmul.f32 1.0, %v1131
      %v1133 = vrcp.pop %v1102
      %v1134 = vmul.f32 1.0, %v1133
      %v1135 = vmul.f32 %v928, %v1104
      %v1136 = vmul.f32 %v930, %v1106
      %v1137 = vmul.f32 %v1017, %v1108
      %v1138 = vmul.f32 %v1019, %v1110
      %v1139 = vmul.f32 %v934, %v1112
      %v1140 = vmul.f32 %v936, %v1114
      %v1141 = vmul.f32 %v1023, %v1116
      %v1142 = vmul.f32 %v1025, %v1118
      %v1143 = vmul.f32 %v940, %v1120
      %v1144 = vmul.f32 %v942, %v1122
      %v1145 = vmul.f32 %v1029, %v1124
      %v1146 = vmul.f32 %v1031, %v1126
      %v1147 = vmul.f32 %v946, %v1128
      %v1148 = vmul.f32 %v948, %v1130
      %v1149 = vmul.f32 %v1035, %v1132
      %v1150 = vmul.f32 %v1037, %v1134
      %s1151 = scalar_lea.vmem %s2, 96
      %v1152 = vld [vmem:[%s1151] sm:$0x1]
      %s1153 = scalar_lea.vmem %s1, 96
      %v1154 = vld [vmem:[%s1153] sm:$0xff]
      %v1155 = vld [vmem:[%s1153 + $0x8] sm:$0xff]
      %v1156 = vld [vmem:[%s1153 + $0x10] sm:$0xff]
      %v1157 = vld [vmem:[%s1153 + $0x18] sm:$0xff]
      %1159 = vset.pattern.permute.xlu0 0
      %1160 = vperm.xlu0 %1159, %v1154
      %v1161 = vpop.permute.xlu0 %1160
      %1164 = vset.pattern.permute.xlu0 0
      %1165 = vperm.xlu0 %1164, %v1155
      %v1166 = vpop.permute.xlu0 %1165
      %1169 = vset.pattern.permute.xlu0 0
      %1170 = vperm.xlu0 %1169, %v1156
      %v1171 = vpop.permute.xlu0 %1170
      %1174 = vset.pattern.permute.xlu0 0
      %1175 = vperm.xlu0 %1174, %v1157
      %v1176 = vpop.permute.xlu0 %1175
      %v1178 = vmul.f32 %v1161, %v1135
      %v1179 = vmul.f32 %v1161, %v1136
      %v1180 = vmul.f32 %v1161, %v1137
      %v1181 = vmul.f32 %v1161, %v1138
      %v1182 = vmul.f32 %v1166, %v1139
      %v1183 = vmul.f32 %v1166, %v1140
      %v1184 = vmul.f32 %v1166, %v1141
      %v1185 = vmul.f32 %v1166, %v1142
      %v1186 = vmul.f32 %v1171, %v1143
      %v1187 = vmul.f32 %v1171, %v1144
      %v1188 = vmul.f32 %v1171, %v1145
      %v1189 = vmul.f32 %v1171, %v1146
      %v1190 = vmul.f32 %v1176, %v1147
      %v1191 = vmul.f32 %v1176, %v1148
      %v1192 = vmul.f32 %v1176, %v1149
      %v1193 = vmul.f32 %v1176, %v1150
      %v1194 = vadd.f32 %v1178, %v1182
      %v1195 = vadd.f32 %v1194, %v1186
      %v1196 = vadd.f32 %v1195, %v1190
      %v1197 = vrot.slane %v1196, 4
      %v1198 = vadd.f32 %v1196, %v1197
      %v1199 = vrot.slane %v1198, 2
      %v1200 = vadd.f32 %v1198, %v1199
      %v1201 = vrot.slane %v1200, 1
      %v1202 = vadd.f32 %v1200, %v1201
      %v1203 = vadd.f32 %v1179, %v1183
      %v1204 = vadd.f32 %v1203, %v1187
      %v1205 = vadd.f32 %v1204, %v1191
      %v1206 = vrot.slane %v1205, 4
      %v1207 = vadd.f32 %v1205, %v1206
      %v1208 = vrot.slane %v1207, 2
      %v1209 = vadd.f32 %v1207, %v1208
      %v1210 = vrot.slane %v1209, 1
      %v1211 = vadd.f32 %v1209, %v1210
      %v1212 = vadd.f32 %v1180, %v1184
      %v1213 = vadd.f32 %v1212, %v1188
      %v1214 = vadd.f32 %v1213, %v1192
      %v1215 = vrot.slane %v1214, 4
      %v1216 = vadd.f32 %v1214, %v1215
      %v1217 = vrot.slane %v1216, 2
      %v1218 = vadd.f32 %v1216, %v1217
      %v1219 = vrot.slane %v1218, 1
      %v1220 = vadd.f32 %v1218, %v1219
      %v1221 = vadd.f32 %v1181, %v1185
      %v1222 = vadd.f32 %v1221, %v1189
      %v1223 = vadd.f32 %v1222, %v1193
      %v1224 = vrot.slane %v1223, 4
      %v1225 = vadd.f32 %v1223, %v1224
      %v1226 = vrot.slane %v1225, 2
      %v1227 = vadd.f32 %v1225, %v1226
      %v1228 = vrot.slane %v1227, 1
      %v1229 = vadd.f32 %v1227, %v1228
      %1231 = vset.pattern.permute.xlu0 0
      %1232 = vperm.xlu0 %1231, %v1152
      %v1233 = vpop.permute.xlu0 %1232
      %v1235 = vadd.f32 %v1202, %v1233
      %v1236 = vadd.f32 %v1211, %v1233
      %v1237 = vadd.f32 %v1220, %v1233
      %v1238 = vadd.f32 %v1229, %v1233
      %v1243 = vcombine.low %v1235, %v1236
      %v1244 = vcombine.low %v1237, %v1238
      %v1246 = vunpack.c.l.s4 1966171168
      %v1247 = vunpack.c.0.s8 %v1246
      %v1248 = vlaneseq
      %v1249 = vshrl.u32 %v1248, 7
      %v1250 = vsub.s32 %v1247, %v1249
      %v1251 = vrot.slane %v1243, %v1250
      %v1253 = vunpack.c.l.s4 1966171168
      %v1254 = vunpack.c.0.s8 %v1253
      %v1255 = vlaneseq
      %v1256 = vshrl.u32 %v1255, 7
      %v1257 = vsub.s32 %v1254, %v1256
      %v1258 = vrot.slane %v1244, %v1257
      %v1259 = vcombine.low %v1251, %v1258
      %v1261 = vunpack.c.l.s4 1966171168
      %v1262 = vunpack.c.0.s8 %v1261
      %v1263 = vlaneseq
      %v1264 = vshrl.u32 %v1263, 7
      %v1265 = vsub.s32 %v1262, %v1264
      %v1266 = vrot.slane %v1259, %v1265
      %v1268 = vlaneseq
      %vm1269 = vcmp.ge.s32.totalorder %v1268, 0
      %vm1270 = vcmp.lt.s32.totalorder %v1268, 512
      %vm1271 = vmand %vm1269, %vm1270
      %1272 = vst.msk [vmem:[%s170] sm:$0xf] %vm1271, %v1266
      %s1273 = smul.u32 4, %s14
      %p1274 = scmp.lt.s32.totalorder %s1273, 7
      %s1275 = scalar_select %p1274, %s1273, 7
      %s1276 = scalar_lea.vmem %s3, %s1275
      // Predicated region
      $region33: #{pinn_forward.1} parent=31 // pred_check
        %p1277 = pneg %p100
      $region34: #{pinn_forward.1} parent=31 // pred_check_branch
        %1279 = sbr.rel (%p1277) target = $region36
      $region35: #{pinn_forward.1} parent=31 // pred_region
        %s1280 = smul.u32 4, %s14
      $region36: #{pinn_forward.1} parent=31 // pred_fallthru
        _
    $region32: #{pinn_forward.1} parent=5 // pred_fallthru
      _
    %p1281 = scmp.le.s32.totalorder 2, %s9
    // Predicated region
    $region37: #{pinn_forward.1} parent=5 // pred_check
      %p1282 = pneg %p1281
    $region38: #{pinn_forward.1} parent=5 // pred_check_branch
      %1284 = sbr.rel (%p1282) target = $region40
    $region39: #{pinn_forward.1} parent=5 // pred_region
      %s1285 = ssub.s32 %s9, 2
      // Predicated region
      $region41: #{pinn_forward.1} parent=39 // pred_check
        %p1286 = pneg %p106
      $region42: #{pinn_forward.1} parent=39 // pred_check_branch
        %1288 = sbr.rel (%p1286) target = $region44
      $region43: #{pinn_forward.1} parent=39 // pred_region
        %s1289 = smul.u32 4, %s15
        %p1290 = scmp.lt.s32.totalorder %s1289, 7
        %s1291 = scalar_select %p1290, %s1289, 7
        %s1292 = scalar_lea.vmem %s3, %s1291
      $region44: #{pinn_forward.1} parent=39 // pred_fallthru
        _
    $region40: #{pinn_forward.1} parent=5 // pred_fallthru
      _
  $region6: #{pinn_forward.1} parent=0 // loop_footer
    %s13 = sadd.s32 1, %s9
  $region7: #{pinn_forward.1} parent=0 // loop_footer_branch
    %8 = sbr.rel target = $region3
  $region8: #{pinn_forward.1} parent=0 // loop_exit
    _

</llo_original>
